<compile_context>
chip_gen: v7x
topology: tpu7x:2x2x1
jax: 0.10.0
libtpu: 0.0.40
codegen_flags: <defaults>
</compile_context>

<pallas_src>
import math
import functools

import jax
import jax.numpy as jnp
from jax import lax
from jax.experimental import pallas as pl
from jax.experimental.pallas import tpu as pltpu


# ----------------------------------------------------------------------------- kernel
def _selfattn_kernel(nvalid_ref,                      # scalar prefetch: (B,) int32 lengths
                     x_ref, w1_ref, wv_ref, wo_ref, bo_ref,
                     score_ref, out_ref,
                     prod_ref,                        # VMEM scratch (E, H*d_v) f32
                     *, n_heads, d_qk, d_v, mxu_dtype, approx_recip):
    """Grid = (B,). One invocation computes every head for one batch element."""
    b = pl.program_id(0)
    n = nvalid_ref[b]                                 # number of valid rows (nodes/edges)
    E = x_ref.shape[1]
    H = n_heads

    x = x_ref[0]                                      # (E, d_in+1), mxu dtype (ones column folds biases)

    # Fused Q|K projection and V projection -- one wide matmul each, f32 accumulation.
    h1 = jnp.dot(x, w1_ref[...], preferred_element_type=jnp.float32)   # (E, 2*H*d_qk)
    v = jnp.dot(x, wv_ref[...], preferred_element_type=jnp.float32)    # (E, H*d_v)

    # Row (query / value) mask and key mask, derived in-kernel from the length scalar.
    row_ids = lax.broadcasted_iota(jnp.int32, (E, 1), 0)
    row_mask = (row_ids < n).astype(jnp.float32)                        # (E, 1)
    key_valid = lax.broadcasted_iota(jnp.int32, (E, E), 1) < n          # (E, E)

    # V.masked_fill(~mask, 0) from the reference module.
    v = v * row_mask

    scale = 1.0 / math.sqrt(d_qk)
    for h in range(H):                                # static unroll over heads
        qh = h1[:, h * d_qk:(h + 1) * d_qk].astype(mxu_dtype)
        kh = h1[:, (H + h) * d_qk:(H + h + 1) * d_qk].astype(mxu_dtype)

        # scores = Q K^T / sqrt(d_qk), contraction on the last dims (no transpose copy).
        s = lax.dot_general(qh, kh, (((1,), (1,)), ((), ())),
                            preferred_element_type=jnp.float32) * scale
        s = jnp.where(key_valid, s, -1e9)             # masked_fill(-1e9) on padded keys
        s = s - jnp.max(s, axis=-1, keepdims=True)
        ez = jnp.exp(s)
        denom = jnp.sum(ez, axis=-1, keepdims=True)
        attn = ez * pl.reciprocal(denom, approx=approx_recip)           # (E, E) f32
        score_ref[0, h] = attn

        vh = v[:, h * d_v:(h + 1) * d_v].astype(mxu_dtype)
        prod_ref[:, h * d_v:(h + 1) * d_v] = jnp.dot(
            attn.astype(mxu_dtype), vh, preferred_element_type=jnp.float32)

    # fc_out on the concatenated per-head products: one (E, H*d_v) @ (H*d_v, d_out) matmul.
    prod = prod_ref[...].astype(mxu_dtype)
    out = jnp.dot(prod, wo_ref[...], preferred_element_type=jnp.float32) + bo_ref[...]

    # batch_like(..., skip_masking=False) -> apply_mask(0) on the output values.
    out_ref[0] = out * row_mask


# ----------------------------------------------------------------------------- wrapper
def self_attn_pallas(values, n_valid, params, *, n_heads, d_qk, d_v, d_out,
                     mxu_dtype=jnp.bfloat16):
    """values: (B, E, d_in) already masked (Batch.apply_mask(0));
    n_valid: (B,) int32 valid-row counts (module's n_nodes / n_edges)."""
    B, E, d_in = values.shape
    H = n_heads
    w1, b1, wv, bv, wo, bo = (params[k] for k in ("w1", "b1", "wv", "bv", "wo", "bo"))

    # Fold fc1 / fc_v biases into the weights via a ones column appended to x.
    ones = jnp.ones((B, E, 1), values.dtype)
    x_aug = jnp.concatenate([values, ones], axis=-1).astype(mxu_dtype)       # (B, E, d_in+1)
    w1_aug = jnp.concatenate([w1, b1[None, :]], axis=0).astype(mxu_dtype)    # (d_in+1, 2*H*d_qk)
    wv_aug = jnp.concatenate([wv, bv[None, :]], axis=0).astype(mxu_dtype)    # (d_in+1, H*d_v)
    wo_c = wo.astype(mxu_dtype)                                              # (H*d_v, d_out)
    bo_2 = bo.reshape(1, d_out).astype(jnp.float32)
    n_valid = n_valid.astype(jnp.int32)

    kernel = functools.partial(
        _selfattn_kernel, n_heads=H, d_qk=d_qk, d_v=d_v, mxu_dtype=mxu_dtype,
        approx_recip=(mxu_dtype != jnp.float32))

    grid_spec = pltpu.PrefetchScalarGridSpec(
        num_scalar_prefetch=1,
        grid=(B,),
        in_specs=[
            pl.BlockSpec((1, E, d_in + 1), lambda b, n: (b, 0, 0)),          # x (+ ones col)
            pl.BlockSpec((d_in + 1, 2 * H * d_qk), lambda b, n: (0, 0)),     # W1|b1 (Q,K)
            pl.BlockSpec((d_in + 1, H * d_v), lambda b, n: (0, 0)),          # Wv|bv
            pl.BlockSpec((H * d_v, d_out), lambda b, n: (0, 0)),             # Wo
            pl.BlockSpec((1, d_out), lambda b, n: (0, 0)),                   # bo
        ],
        out_specs=[
            pl.BlockSpec((1, H, E, E), lambda b, n: (b, 0, 0, 0)),           # attn_score
            pl.BlockSpec((1, E, d_out), lambda b, n: (b, 0, 0)),             # output values
        ],
        scratch_shapes=[pltpu.VMEM((E, H * d_v), jnp.float32)],              # concat(prod_h)
    )

    attn_score, out = pl.pallas_call(
        kernel,
        out_shape=(
            jax.ShapeDtypeStruct((B, H, E, E), jnp.float32),
            jax.ShapeDtypeStruct((B, E, d_out), jnp.float32),
        ),
        grid_spec=grid_spec,
        compiler_params=pltpu.CompilerParams(
            dimension_semantics=("parallel",)),       # B shards across v7x's 2 TCs
    )(n_valid, x_aug, w1_aug, wv_aug, wo_c, bo_2)
    return attn_score, out


# ----------------------------------------------------------------------------- pure-JAX reference
def self_attn_ref(values, mask, params, *, n_heads, d_qk, d_v, d_out):
    B, E, d_in = values.shape
    H = n_heads
    h = values @ params["w1"] + params["b1"]
    Q = h[..., : H * d_qk].reshape(B, E, H, d_qk).transpose(0, 2, 1, 3)
    K = h[..., H * d_qk:].reshape(B, E, H, d_qk).transpose(0, 2, 1, 3)
    V = values @ params["wv"] + params["bv"]
    V = jnp.where(mask[..., None], V, 0.0).reshape(B, E, H, d_v).transpose(0, 2, 1, 3)
    scores = jnp.einsum("bhqd,bhkd->bhqk", Q, K) / math.sqrt(d_qk)
    scores = jnp.where(mask[:, None, None, :], scores, -1e9)
    attn = jax.nn.softmax(scores, axis=-1)
    prod = jnp.einsum("bhqk,bhkd->bhqd", attn, V).transpose(0, 2, 1, 3).reshape(B, E, H * d_v)
    out = prod @ params["wo"] + params["bo"]
    out = jnp.where(mask[..., None], out, 0.0)
    return attn, out


# ----------------------------------------------------------------------------- main
if __name__ == "__main__":
    # small shapes consistent with the module (d_in -> n_heads * d_qk/d_v projections)
    B, E = 2, 8
    n_heads, d_in, d_out, d_qk, d_v = 2, 16, 16, 32, 32

    key = jax.random.PRNGKey(0)
    ks = jax.random.split(key, 8)

    def uinit(k, shape, fan_in):
        bound = 1.0 / math.sqrt(fan_in)
        return jax.random.uniform(k, shape, jnp.float32, -bound, bound)

    params = {
        "w1": uinit(ks[0], (d_in, 2 * n_heads * d_qk), d_in),
        "b1": uinit(ks[1], (2 * n_heads * d_qk,), d_in),
        "wv": uinit(ks[2], (d_in, n_heads * d_v), d_in),
        "bv": uinit(ks[3], (n_heads * d_v,), d_in),
        "wo": uinit(ks[4], (n_heads * d_v, d_out), n_heads * d_v),
        "bo": uinit(ks[5], (d_out,), n_heads * d_v),
    }

    # padded graph batch: n_nodes = [8, 5]  (Batch's prefix mask via get_mask)
    n_nodes = jnp.array([8, 5], dtype=jnp.int32)
    mask = jnp.arange(E)[None, :] < n_nodes[:, None]                 # (B, E) bool
    values = jax.random.normal(ks[6], (B, E, d_in), jnp.float32)
    values = jnp.where(mask[..., None], values, 0.0)                 # Batch.apply_mask(0)

    attn_gold, out_gold = self_attn_ref(
        values, mask, params, n_heads=n_heads, d_qk=d_qk, d_v=d_v, d_out=d_out)

    # 1) f32 MXU path: tight structural / semantic check.
    attn32, out32 = self_attn_pallas(
        values, n_nodes, params, n_heads=n_heads, d_qk=d_qk, d_v=d_v, d_out=d_out,
        mxu_dtype=jnp.float32)
    jax.block_until_ready((attn32, out32))
    assert jnp.allclose(attn32, attn_gold, atol=1e-4, rtol=1e-4)
    assert jnp.allclose(out32, out_gold, atol=1e-4, rtol=1e-4)

    # 2) bf16 MXU path (recommended perf config for v6e/v7x): looser tolerance.
    attn16, out16 = self_attn_pallas(
        values, n_nodes, params, n_heads=n_heads, d_qk=d_qk, d_v=d_v, d_out=d_out,
        mxu_dtype=jnp.bfloat16)
    jax.block_until_ready((attn16, out16))
    assert jnp.allclose(attn16, attn_gold, atol=2.5e-2, rtol=2.5e-2)
    assert jnp.allclose(out16, out_gold, atol=5e-2, rtol=5e-2)

    print("KERNEL_OK")
</pallas_src>

<mosaic_0001>
module attributes {stable_mosaic.version = 11 : i64} {
  func.func @_selfattn_kernel(%arg0: i32, %arg1: memref<2xi32, #tpu.memory_space<smem>>, %arg2: memref<1x8x17xf32, #tpu.memory_space<vmem>>, %arg3: memref<17x128xf32, #tpu.memory_space<vmem>>, %arg4: memref<17x64xf32, #tpu.memory_space<vmem>>, %arg5: memref<64x16xf32, #tpu.memory_space<vmem>>, %arg6: memref<1x16xf32, #tpu.memory_space<vmem>>, %arg7: memref<1x2x8x8xf32, #tpu.memory_space<vmem>>, %arg8: memref<1x8x16xf32, #tpu.memory_space<vmem>>, %arg9: memref<8x64xf32, #tpu.memory_space<vmem>>) attributes {dimension_semantics = [#tpu.dimension_semantics<parallel>], iteration_bounds = array<i64: 2>, scalar_prefetch = 1 : i64, scratch_operands = 1 : i64, tpu.core_type = #tpu.core_type<tc>, window_params = [{transform_indices = @transform_0, window_bounds = array<i64: 1, 8, 17>}, {pipeline_mode = #tpu.pipeline_mode<synchronous>, transform_indices = @transform_1, window_bounds = array<i64: 17, 128>}, {pipeline_mode = #tpu.pipeline_mode<synchronous>, transform_indices = @transform_2, window_bounds = array<i64: 17, 64>}, {pipeline_mode = #tpu.pipeline_mode<synchronous>, transform_indices = @transform_3, window_bounds = array<i64: 64, 16>}, {pipeline_mode = #tpu.pipeline_mode<synchronous>, transform_indices = @transform_4, window_bounds = array<i64: 1, 16>}, {transform_indices = @transform_5, window_bounds = array<i64: 1, 2, 8, 8>}, {transform_indices = @transform_6, window_bounds = array<i64: 1, 8, 16>}]} {
    %0 = arith.index_cast %arg0 : i32 to index
    %1 = memref.load %arg1[%0] : memref<2xi32, #tpu.memory_space<smem>>
    %c0 = arith.constant 0 : index
    %c0_0 = arith.constant 0 : index
    %c0_1 = arith.constant 0 : index
    %2 = vector.load %arg2[%c0, %c0_0, %c0_1] : memref<1x8x17xf32, #tpu.memory_space<vmem>>, vector<1x8x17xf32>
    %3 = vector.shape_cast %2 : vector<1x8x17xf32> to vector<8x17xf32>
    %c0_2 = arith.constant 0 : index
    %c0_3 = arith.constant 0 : index
    %4 = vector.load %arg3[%c0_2, %c0_3] : memref<17x128xf32, #tpu.memory_space<vmem>>, vector<17x128xf32>
    %cst = arith.constant dense<0.000000e+00> : vector<8x128xf32>
    %5 = tpu.matmul %3, %4, %cst {dimension_numbers = #tpu.dot_dimension_numbers<[1], [0], [0], [1], [0, 0, 1, 1], [], []>} : vector<8x17xf32>, vector<17x128xf32>, vector<8x128xf32> -> vector<8x128xf32>
    %c0_4 = arith.constant 0 : index
    %c0_5 = arith.constant 0 : index
    %6 = vector.load %arg4[%c0_4, %c0_5] : memref<17x64xf32, #tpu.memory_space<vmem>>, vector<17x64xf32>
    %cst_6 = arith.constant dense<0.000000e+00> : vector<8x64xf32>
    %7 = tpu.matmul %3, %6, %cst_6 {dimension_numbers = #tpu.dot_dimension_numbers<[1], [0], [0], [1], [0, 0, 1, 1], [], []>} : vector<8x17xf32>, vector<17x64xf32>, vector<8x64xf32> -> vector<8x64xf32>
    %8 = tpu.iota {dimensions = array<i32: 0>} : vector<8x1xi32>
    %9 = vector.broadcast %1 : i32 to vector<8x1xi32>
    %10 = arith.cmpi slt, %8, %9 : vector<8x1xi32>
    %11 = arith.extui %10 : vector<8x1xi1> to vector<8x1xi32>
    %12 = arith.sitofp %11 : vector<8x1xi32> to vector<8x1xf32>
    %13 = tpu.iota {dimensions = array<i32: 1>} : vector<8x8xi32>
    %14 = vector.broadcast %1 : i32 to vector<8x8xi32>
    %15 = arith.cmpi slt, %13, %14 : vector<8x8xi32>
    %16 = vector.broadcast %12 : vector<8x1xf32> to vector<8x64xf32>
    %17 = arith.mulf %7, %16 : vector<8x64xf32>
    %18 = vector.extract_strided_slice %5 {offsets = [0, 0], sizes = [8, 32], strides = [1, 1]} : vector<8x128xf32> to vector<8x32xf32>
    %19 = vector.extract_strided_slice %5 {offsets = [0, 64], sizes = [8, 32], strides = [1, 1]} : vector<8x128xf32> to vector<8x32xf32>
    %cst_7 = arith.constant dense<0.000000e+00> : vector<8x8xf32>
    %20 = tpu.matmul %18, %19, %cst_7 {dimension_numbers = #tpu.dot_dimension_numbers<[1], [1], [0], [0], [0, 0, 1, 0], [], []>} : vector<8x32xf32>, vector<8x32xf32>, vector<8x8xf32> -> vector<8x8xf32>
    %cst_8 = arith.constant 0.176776692 : f32
    %21 = vector.broadcast %cst_8 : f32 to vector<8x8xf32>
    %22 = arith.mulf %20, %21 : vector<8x8xf32>
    %cst_9 = arith.constant -1.000000e+09 : f32
    %23 = vector.broadcast %cst_9 : f32 to vector<8x8xf32>
    %24 = arith.select %15, %22, %23 : vector<8x8xi1>, vector<8x8xf32>
    %cst_10 = arith.constant dense<0xFF800000> : vector<8xf32>
    %25 = vector.multi_reduction <maximumf>, %24, %cst_10 [1] : vector<8x8xf32> to vector<8xf32>
    %26 = vector.shape_cast %25 : vector<8xf32> to vector<8x1xf32>
    %27 = vector.broadcast %26 : vector<8x1xf32> to vector<8x8xf32>
    %28 = arith.subf %24, %27 : vector<8x8xf32>
    %29 = math.exp %28 : vector<8x8xf32>
    %cst_11 = arith.constant dense<0.000000e+00> : vector<8xf32>
    %30 = vector.multi_reduction <add>, %29, %cst_11 [1] : vector<8x8xf32> to vector<8xf32>
    %31 = vector.shape_cast %30 : vector<8xf32> to vector<8x1xf32>
    %32 = tpu.reciprocal %31 : vector<8x1xf32> -> vector<8x1xf32>
    %33 = vector.broadcast %32 : vector<8x1xf32> to vector<8x8xf32>
    %34 = arith.mulf %29, %33 : vector<8x8xf32>
    %c0_12 = arith.constant 0 : index
    %c0_13 = arith.constant 0 : index
    %c0_14 = arith.constant 0 : index
    %c0_15 = arith.constant 0 : index
    %35 = vector.load %arg7[%c0_12, %c0_13, %c0_14, %c0_15] : memref<1x2x8x8xf32, #tpu.memory_space<vmem>>, vector<1x1x8x8xf32>
    %36 = vector.shape_cast %35 : vector<1x1x8x8xf32> to vector<8x8xf32>
    %37 = vector.shape_cast %34 : vector<8x8xf32> to vector<1x1x8x8xf32>
    tpu.vector_store %arg7[%c0_12, %c0_13, %c0_14, %c0_15], %37 {strides = array<i32>} : memref<1x2x8x8xf32, #tpu.memory_space<vmem>>, vector<1x1x8x8xf32>,
    %38 = vector.extract_strided_slice %17 {offsets = [0, 0], sizes = [8, 32], strides = [1, 1]} : vector<8x64xf32> to vector<8x32xf32>
    %cst_16 = arith.constant dense<0.000000e+00> : vector<8x32xf32>
    %39 = tpu.matmul %34, %38, %cst_16 {dimension_numbers = #tpu.dot_dimension_numbers<[1], [0], [0], [1], [0, 0, 1, 1], [], []>} : vector<8x8xf32>, vector<8x32xf32>, vector<8x32xf32> -> vector<8x32xf32>
    %c0_17 = arith.constant 0 : index
    %c0_18 = arith.constant 0 : index
    %40 = vector.load %arg9[%c0_17, %c0_18] : memref<8x64xf32, #tpu.memory_space<vmem>>, vector<8x32xf32>
    tpu.vector_store %arg9[%c0_17, %c0_18], %39 {strides = array<i32>} : memref<8x64xf32, #tpu.memory_space<vmem>>, vector<8x32xf32>,
    %41 = vector.extract_strided_slice %5 {offsets = [0, 32], sizes = [8, 32], strides = [1, 1]} : vector<8x128xf32> to vector<8x32xf32>
    %42 = vector.extract_strided_slice %5 {offsets = [0, 96], sizes = [8, 32], strides = [1, 1]} : vector<8x128xf32> to vector<8x32xf32>
    %cst_19 = arith.constant dense<0.000000e+00> : vector<8x8xf32>
    %43 = tpu.matmul %41, %42, %cst_19 {dimension_numbers = #tpu.dot_dimension_numbers<[1], [1], [0], [0], [0, 0, 1, 0], [], []>} : vector<8x32xf32>, vector<8x32xf32>, vector<8x8xf32> -> vector<8x8xf32>
    %cst_20 = arith.constant 0.176776692 : f32
    %44 = vector.broadcast %cst_20 : f32 to vector<8x8xf32>
    %45 = arith.mulf %43, %44 : vector<8x8xf32>
    %cst_21 = arith.constant -1.000000e+09 : f32
    %46 = vector.broadcast %cst_21 : f32 to vector<8x8xf32>
    %47 = arith.select %15, %45, %46 : vector<8x8xi1>, vector<8x8xf32>
    %cst_22 = arith.constant dense<0xFF800000> : vector<8xf32>
    %48 = vector.multi_reduction <maximumf>, %47, %cst_22 [1] : vector<8x8xf32> to vector<8xf32>
    %49 = vector.shape_cast %48 : vector<8xf32> to vector<8x1xf32>
    %50 = vector.broadcast %49 : vector<8x1xf32> to vector<8x8xf32>
    %51 = arith.subf %47, %50 : vector<8x8xf32>
    %52 = math.exp %51 : vector<8x8xf32>
    %cst_23 = arith.constant dense<0.000000e+00> : vector<8xf32>
    %53 = vector.multi_reduction <add>, %52, %cst_23 [1] : vector<8x8xf32> to vector<8xf32>
    %54 = vector.shape_cast %53 : vector<8xf32> to vector<8x1xf32>
    %55 = tpu.reciprocal %54 : vector<8x1xf32> -> vector<8x1xf32>
    %56 = vector.broadcast %55 : vector<8x1xf32> to vector<8x8xf32>
    %57 = arith.mulf %52, %56 : vector<8x8xf32>
    %c0_24 = arith.constant 0 : index
    %c1 = arith.constant 1 : index
    %c0_25 = arith.constant 0 : index
    %c0_26 = arith.constant 0 : index
    %58 = vector.load %arg7[%c0_24, %c1, %c0_25, %c0_26] : memref<1x2x8x8xf32, #tpu.memory_space<vmem>>, vector<1x1x8x8xf32>
    %59 = vector.shape_cast %58 : vector<1x1x8x8xf32> to vector<8x8xf32>
    %60 = vector.shape_cast %57 : vector<8x8xf32> to vector<1x1x8x8xf32>
    tpu.vector_store %arg7[%c0_24, %c1, %c0_25, %c0_26], %60 {strides = array<i32>} : memref<1x2x8x8xf32, #tpu.memory_space<vmem>>, vector<1x1x8x8xf32>,
    %61 = vector.extract_strided_slice %17 {offsets = [0, 32], sizes = [8, 32], strides = [1, 1]} : vector<8x64xf32> to vector<8x32xf32>
    %cst_27 = arith.constant dense<0.000000e+00> : vector<8x32xf32>
    %62 = tpu.matmul %57, %61, %cst_27 {dimension_numbers = #tpu.dot_dimension_numbers<[1], [0], [0], [1], [0, 0, 1, 1], [], []>} : vector<8x8xf32>, vector<8x32xf32>, vector<8x32xf32> -> vector<8x32xf32>
    %c0_28 = arith.constant 0 : index
    %c32 = arith.constant 32 : index
    %63 = vector.load %arg9[%c0_28, %c32] : memref<8x64xf32, #tpu.memory_space<vmem>>, vector<8x32xf32>
    tpu.vector_store %arg9[%c0_28, %c32], %62 {strides = array<i32>} : memref<8x64xf32, #tpu.memory_space<vmem>>, vector<8x32xf32>,
    %c0_29 = arith.constant 0 : index
    %c0_30 = arith.constant 0 : index
    %64 = vector.load %arg9[%c0_29, %c0_30] : memref<8x64xf32, #tpu.memory_space<vmem>>, vector<8x64xf32>
    %c0_31 = arith.constant 0 : index
    %c0_32 = arith.constant 0 : index
    %65 = vector.load %arg5[%c0_31, %c0_32] : memref<64x16xf32, #tpu.memory_space<vmem>>, vector<64x16xf32>
    %cst_33 = arith.constant dense<0.000000e+00> : vector<8x16xf32>
    %66 = tpu.matmul %64, %65, %cst_33 {dimension_numbers = #tpu.dot_dimension_numbers<[1], [0], [0], [1], [0, 0, 1, 1], [], []>} : vector<8x64xf32>, vector<64x16xf32>, vector<8x16xf32> -> vector<8x16xf32>
    %c0_34 = arith.constant 0 : index
    %c0_35 = arith.constant 0 : index
    %67 = vector.load %arg6[%c0_34, %c0_35] : memref<1x16xf32, #tpu.memory_space<vmem>>, vector<1x16xf32>
    %68 = vector.broadcast %67 : vector<1x16xf32> to vector<8x16xf32>
    %69 = arith.addf %66, %68 : vector<8x16xf32>
    %70 = vector.broadcast %12 : vector<8x1xf32> to vector<8x16xf32>
    %71 = arith.mulf %69, %70 : vector<8x16xf32>
    %c0_36 = arith.constant 0 : index
    %c0_37 = arith.constant 0 : index
    %c0_38 = arith.constant 0 : index
    %72 = vector.load %arg8[%c0_36, %c0_37, %c0_38] : memref<1x8x16xf32, #tpu.memory_space<vmem>>, vector<1x8x16xf32>
    %73 = vector.shape_cast %72 : vector<1x8x16xf32> to vector<8x16xf32>
    %74 = vector.shape_cast %71 : vector<8x16xf32> to vector<1x8x16xf32>
    tpu.vector_store %arg8[%c0_36, %c0_37, %c0_38], %74 {strides = array<i32>} : memref<1x8x16xf32, #tpu.memory_space<vmem>>, vector<1x8x16xf32>,
    return
  }
  func.func @transform_0(%arg0: i32, %arg1: memref<2xi32, #tpu.memory_space<smem>>) -> (i32, i32, i32) {
    %c0_i32 = arith.constant 0 : i32
    %c0_i32_0 = arith.constant 0 : i32
    %c0_i32_1 = arith.constant 0 : i32
    return %arg0, %c0_i32, %c0_i32_0 : i32, i32, i32
  }
  func.func @transform_1(%arg0: i32, %arg1: memref<2xi32, #tpu.memory_space<smem>>) -> (i32, i32) {
    %c0_i32 = arith.constant 0 : i32
    %c0_i32_0 = arith.constant 0 : i32
    %c0_i32_1 = arith.constant 0 : i32
    return %c0_i32, %c0_i32_0 : i32, i32
  }
  func.func @transform_2(%arg0: i32, %arg1: memref<2xi32, #tpu.memory_space<smem>>) -> (i32, i32) {
    %c0_i32 = arith.constant 0 : i32
    %c0_i32_0 = arith.constant 0 : i32
    %c0_i32_1 = arith.constant 0 : i32
    return %c0_i32, %c0_i32_0 : i32, i32
  }
  func.func @transform_3(%arg0: i32, %arg1: memref<2xi32, #tpu.memory_space<smem>>) -> (i32, i32) {
    %c0_i32 = arith.constant 0 : i32
    %c0_i32_0 = arith.constant 0 : i32
    %c0_i32_1 = arith.constant 0 : i32
    return %c0_i32, %c0_i32_0 : i32, i32
  }
  func.func @transform_4(%arg0: i32, %arg1: memref<2xi32, #tpu.memory_space<smem>>) -> (i32, i32) {
    %c0_i32 = arith.constant 0 : i32
    %c0_i32_0 = arith.constant 0 : i32
    %c0_i32_1 = arith.constant 0 : i32
    return %c0_i32, %c0_i32_0 : i32, i32
  }
  func.func @transform_5(%arg0: i32, %arg1: memref<2xi32, #tpu.memory_space<smem>>) -> (i32, i32, i32, i32) {
    %c0_i32 = arith.constant 0 : i32
    %c0_i32_0 = arith.constant 0 : i32
    %c0_i32_1 = arith.constant 0 : i32
    %c0_i32_2 = arith.constant 0 : i32
    return %arg0, %c0_i32, %c0_i32_0, %c0_i32_1 : i32, i32, i32, i32
  }
  func.func @transform_6(%arg0: i32, %arg1: memref<2xi32, #tpu.memory_space<smem>>) -> (i32, i32, i32) {
    %c0_i32 = arith.constant 0 : i32
    %c0_i32_0 = arith.constant 0 : i32
    %c0_i32_1 = arith.constant 0 : i32
    return %arg0, %c0_i32, %c0_i32_0 : i32, i32, i32
  }
}

</mosaic_0001>

<llo_original>
// kernel: tpu_custom_call.1
$region0: #{tpu_custom_call.1}
  #allocation0 [shape = 'u32[]', space=smem, size = 0x4, offset = 0x4, fixed_abs, tag = 'smem constant byte address 0x4 - core index']
  #allocation1 [shape = 'u32[144,128]{1,0:T(1,128)}', space=vmem, size = 0x12000, scoped, tag = 'internal scratch']
  #allocation2 [shape = 'f32[8,64]{1,0:T(8,128)}', space=vmem, size = 0x1000, scoped, tag = 'scratch operand']
  #allocation3 [shape = 's32[1]{0}', space=sflag, size = 0x4, scoped, tag = 'scoped memory for tpu_custom_call.1']
  #allocation4 [shape = 'u8[512]{0}', space=smem, size = 0x200, scoped, tag = 'prefetched SMEM operand 0']
  %s0 = inlined_call_operand.vmem [shape: s32[2], index: 0, kind: input, shape index: {}]
  %s1 = inlined_call_operand.vmem [shape: f32[2,8,17], index: 1, kind: input, shape index: {}]
  %s2 = inlined_call_operand.vmem [shape: f32[17,128], index: 2, kind: input, shape index: {}]
  %s3 = inlined_call_operand.vmem [shape: f32[17,64], index: 3, kind: input, shape index: {}]
  %s4 = inlined_call_operand.vmem [shape: f32[64,16], index: 4, kind: input, shape index: {}]
  %s5 = inlined_call_operand.vmem [shape: f32[1,16], index: 5, kind: input, shape index: {}]
  %s6 = inlined_call_operand.hbm [shape: f32[2,2,8,8], index: 6, kind: output, shape index: {0}]
  %s7 = inlined_call_operand.hbm [shape: f32[2,8,16], index: 7, kind: output, shape index: {1}]
  %8 = xla_tuple %s6, %s7
  %s9 = sld [smem:[#allocation0]]
  $region61: #{tpu_custom_call.1} parent=0
    _
  %s11 = ssub.s32 1, %s9
  %s12 = scalar_select 0, %s11, %s9
  %s13 = sshll.u32 %s0, 4
  %s14 = int_to_ptr.vmem [resolvable:$true] %s13
  %16 = dma.vmem_to_smem %s14, 16, [#allocation4], [#allocation3]
  %17 = dma.done [#allocation3], 16
  %18 = sfence
  $region1: #{tpu_custom_call.1} parent=0
    #allocation5 [shape = 'u8[16384]{0}', space=vmem, size = 0x4000, scoped, tag = 'output window, operand 0']
    #allocation6 [shape = 's32[2]{0}', space=sflag, size = 0x8, scoped, tag = 'scoped memory for tpu_custom_call.1']
    #allocation7 [shape = 'u8[8192]{0}', space=vmem, size = 0x2000, scoped, tag = 'output window, operand 1']
    #allocation8 [shape = 's32[2]{0}', space=sflag, size = 0x8, scoped, tag = 'scoped memory for tpu_custom_call.1']
    %19 = vsyncpa [#allocation6], 0
    %s20 = scalar_lea.sflag [#allocation6], 1
    %21 = vsyncpa %s20, 0
    %22 = vsyncpa [#allocation8], 0
    %s23 = scalar_lea.sflag [#allocation8], 1
    %24 = vsyncpa %s23, 0
    loop: start=0, step=1, limit=4
    $region2: #{tpu_custom_call.1} parent=1 // loop_pre_header
      _
    $region3: #{tpu_custom_call.1} parent=1 // loop_header
      %s26 = sphi 0, %s30
      %p27 = scmp.ge.s32.totalorder %s26, 4
      %s36 = sphi 0, %s38
      %s39 = sphi 0, %s36
      %s40 = sphi 0, %s39
      %s56 = sphi 0, %s40
      %s60 = sphi 0, %s60
      %s62 = sphi 0, %s60
      %s63 = sphi 0, %s62
      %s77 = sphi 0, %s63
      %s81 = sphi 0, %s81
      %s83 = sphi 0, %s81
      %s84 = sphi 0, %s83
      %s98 = sphi 0, %s84
      %s102 = sphi 0, %s102
      %s104 = sphi 0, %s102
      %s105 = sphi 0, %s104
      %s119 = sphi 0, %s105
      %s123 = sphi 0, %s123
      %s125 = sphi 0, %s123
      %s126 = sphi 0, %s125
      %s140 = sphi 0, %s126
      %s146 = sphi 0, %s148
      %s149 = sphi 0, %s146
      %s150 = sphi 0, %s149
      %s166 = sphi 0, %s150
      %s172 = sphi 0, %s174
      %s175 = sphi 0, %s172
      %s176 = sphi 0, %s175
      %s192 = sphi 0, %s176
    $region4: #{tpu_custom_call.1} parent=1 // loop_header_branch
      %29 = sbr.rel (%p27) target = $region8
    $region5: #{tpu_custom_call.1} parent=1 // loop_body
      %s31 = ssub.s32 %s26, 1
      %s32 = ssub.s32 %s26, 2
      %s33 = sadd.s32 %s26, 1
      %s34 = ssub.s32 %s26, %s33
      %p35 = scmp.eq.s32.totalorder %s34, 0
      %s37 = sadd.s32 %s36, 1
      %s38 = scalar_select %p35, %s36, %s37
      %p41 = pneg %p35
      %p42 = scmp.eq.s32.totalorder %s26, 1
      %p43 = por %p41, %p42
      %p44 = scmp.ne.s32.totalorder %s36, %s39
      %p45 = scmp.eq.s32.totalorder %s26, 0
      %p46 = por %p44, %p45
      %p47 = scmp.ne.s32.totalorder %s36, %s39
      %p48 = scmp.eq.s32.totalorder %s31, 1
      %p49 = por %p47, %p48
      %p50 = scmp.ne.s32.totalorder %s39, %s40
      %p51 = scmp.eq.s32.totalorder %s31, 0
      %p52 = por %p50, %p51
      %p53 = scmp.ne.s32.totalorder %s39, %s40
      %p54 = scmp.eq.s32.totalorder %s32, 1
      %p55 = por %p53, %p54
      %p57 = scmp.ne.s32.totalorder %s40, %s56
      %p58 = scmp.eq.s32.totalorder %s32, 0
      %p59 = por %p57, %p58
      %s61 = sadd.s32 %s60, 1
      %p64 = scmp.eq.s32.totalorder %s26, 1
      %p65 = scmp.ne.s32.totalorder %s60, %s62
      %p66 = scmp.eq.s32.totalorder %s26, 0
      %p67 = por %p65, %p66
      %p68 = scmp.ne.s32.totalorder %s60, %s62
      %p69 = scmp.eq.s32.totalorder %s31, 1
      %p70 = por %p68, %p69
      %p71 = scmp.ne.s32.totalorder %s62, %s63
      %p72 = scmp.eq.s32.totalorder %s31, 0
      %p73 = por %p71, %p72
      %p74 = scmp.ne.s32.totalorder %s62, %s63
      %p75 = scmp.eq.s32.totalorder %s32, 1
      %p76 = por %p74, %p75
      %p78 = scmp.ne.s32.totalorder %s63, %s77
      %p79 = scmp.eq.s32.totalorder %s32, 0
      %p80 = por %p78, %p79
      %s82 = sadd.s32 %s81, 1
      %p85 = scmp.eq.s32.totalorder %s26, 1
      %p86 = scmp.ne.s32.totalorder %s81, %s83
      %p87 = scmp.eq.s32.totalorder %s26, 0
      %p88 = por %p86, %p87
      %p89 = scmp.ne.s32.totalorder %s81, %s83
      %p90 = scmp.eq.s32.totalorder %s31, 1
      %p91 = por %p89, %p90
      %p92 = scmp.ne.s32.totalorder %s83, %s84
      %p93 = scmp.eq.s32.totalorder %s31, 0
      %p94 = por %p92, %p93
      %p95 = scmp.ne.s32.totalorder %s83, %s84
      %p96 = scmp.eq.s32.totalorder %s32, 1
      %p97 = por %p95, %p96
      %p99 = scmp.ne.s32.totalorder %s84, %s98
      %p100 = scmp.eq.s32.totalorder %s32, 0
      %p101 = por %p99, %p100
      %s103 = sadd.s32 %s102, 1
      %p106 = scmp.eq.s32.totalorder %s26, 1
      %p107 = scmp.ne.s32.totalorder %s102, %s104
      %p108 = scmp.eq.s32.totalorder %s26, 0
      %p109 = por %p107, %p108
      %p110 = scmp.ne.s32.totalorder %s102, %s104
      %p111 = scmp.eq.s32.totalorder %s31, 1
      %p112 = por %p110, %p111
      %p113 = scmp.ne.s32.totalorder %s104, %s105
      %p114 = scmp.eq.s32.totalorder %s31, 0
      %p115 = por %p113, %p114
      %p116 = scmp.ne.s32.totalorder %s104, %s105
      %p117 = scmp.eq.s32.totalorder %s32, 1
      %p118 = por %p116, %p117
      %p120 = scmp.ne.s32.totalorder %s105, %s119
      %p121 = scmp.eq.s32.totalorder %s32, 0
      %p122 = por %p120, %p121
      %s124 = sadd.s32 %s123, 1
      %p127 = scmp.eq.s32.totalorder %s26, 1
      %p128 = scmp.ne.s32.totalorder %s123, %s125
      %p129 = scmp.eq.s32.totalorder %s26, 0
      %p130 = por %p128, %p129
      %p131 = scmp.ne.s32.totalorder %s123, %s125
      %p132 = scmp.eq.s32.totalorder %s31, 1
      %p133 = por %p131, %p132
      %p134 = scmp.ne.s32.totalorder %s125, %s126
      %p135 = scmp.eq.s32.totalorder %s31, 0
      %p136 = por %p134, %p135
      %p137 = scmp.ne.s32.totalorder %s125, %s126
      %p138 = scmp.eq.s32.totalorder %s32, 1
      %p139 = por %p137, %p138
      %p141 = scmp.ne.s32.totalorder %s126, %s140
      %p142 = scmp.eq.s32.totalorder %s32, 0
      %p143 = por %p141, %p142
      %s144 = ssub.s32 %s26, %s33
      %p145 = scmp.eq.s32.totalorder %s144, 0
      %s147 = sadd.s32 %s146, 1
      %s148 = scalar_select %p145, %s146, %s147
      %p151 = pneg %p145
      %p152 = scmp.eq.s32.totalorder %s26, 1
      %p153 = por %p151, %p152
      %p154 = scmp.ne.s32.totalorder %s146, %s149
      %p155 = scmp.eq.s32.totalorder %s26, 0
      %p156 = por %p154, %p155
      %p157 = scmp.ne.s32.totalorder %s146, %s149
      %p158 = scmp.eq.s32.totalorder %s31, 1
      %p159 = por %p157, %p158
      %p160 = scmp.ne.s32.totalorder %s149, %s150
      %p161 = scmp.eq.s32.totalorder %s31, 0
      %p162 = por %p160, %p161
      %p163 = scmp.ne.s32.totalorder %s149, %s150
      %p164 = scmp.eq.s32.totalorder %s32, 1
      %p165 = por %p163, %p164
      %p167 = scmp.ne.s32.totalorder %s150, %s166
      %p168 = scmp.eq.s32.totalorder %s32, 0
      %p169 = por %p167, %p168
      %s170 = ssub.s32 %s26, %s33
      %p171 = scmp.eq.s32.totalorder %s170, 0
      %s173 = sadd.s32 %s172, 1
      %s174 = scalar_select %p171, %s172, %s173
      %p177 = pneg %p171
      %p178 = scmp.eq.s32.totalorder %s26, 1
      %p179 = por %p177, %p178
      %p180 = scmp.ne.s32.totalorder %s172, %s175
      %p181 = scmp.eq.s32.totalorder %s26, 0
      %p182 = por %p180, %p181
      %p183 = scmp.ne.s32.totalorder %s172, %s175
      %p184 = scmp.eq.s32.totalorder %s31, 1
      %p185 = por %p183, %p184
      %p186 = scmp.ne.s32.totalorder %s175, %s176
      %p187 = scmp.eq.s32.totalorder %s31, 0
      %p188 = por %p186, %p187
      %p189 = scmp.ne.s32.totalorder %s175, %s176
      %p190 = scmp.eq.s32.totalorder %s32, 1
      %p191 = por %p189, %p190
      %p193 = scmp.ne.s32.totalorder %s176, %s192
      %p194 = scmp.eq.s32.totalorder %s32, 0
      %p195 = por %p193, %p194
      %p196 = scmp.le.s32.totalorder 1, %s26
      %p197 = scmp.lt.s32.totalorder %s26, 3
      %p198 = pnand %p196, %p197
      %p199 = pneg %p198
      // Predicated region
      $region9: #{tpu_custom_call.1} parent=5 // pred_check
        _
      $region10: #{tpu_custom_call.1} parent=5 // pred_check_branch
        %201 = sbr.rel (%p198) target = $region12
      $region11: #{tpu_custom_call.1} parent=5 // pred_region
        %s202 = ssub.s32 %s26, 1
        // Predicated region
        $region13: #{tpu_custom_call.1} parent=11 // pred_check
          %p203 = pneg %p73
        $region14: #{tpu_custom_call.1} parent=11 // pred_check_branch
          %205 = sbr.rel (%p203) target = $region16
        $region15: #{tpu_custom_call.1} parent=11 // pred_region
          _
        $region16: #{tpu_custom_call.1} parent=11 // pred_fallthru
          _
        // Predicated region
        $region17: #{tpu_custom_call.1} parent=11 // pred_check
          %p206 = pneg %p94
        $region18: #{tpu_custom_call.1} parent=11 // pred_check_branch
          %208 = sbr.rel (%p206) target = $region20
        $region19: #{tpu_custom_call.1} parent=11 // pred_region
          _
        $region20: #{tpu_custom_call.1} parent=11 // pred_fallthru
          _
        // Predicated region
        $region21: #{tpu_custom_call.1} parent=11 // pred_check
          %p209 = pneg %p115
        $region22: #{tpu_custom_call.1} parent=11 // pred_check_branch
          %211 = sbr.rel (%p209) target = $region24
        $region23: #{tpu_custom_call.1} parent=11 // pred_region
          _
        $region24: #{tpu_custom_call.1} parent=11 // pred_fallthru
          _
        // Predicated region
        $region25: #{tpu_custom_call.1} parent=11 // pred_check
          %p212 = pneg %p136
        $region26: #{tpu_custom_call.1} parent=11 // pred_check_branch
          %214 = sbr.rel (%p212) target = $region28
        $region27: #{tpu_custom_call.1} parent=11 // pred_region
          _
        $region28: #{tpu_custom_call.1} parent=11 // pred_fallthru
          _
      $region12: #{tpu_custom_call.1} parent=5 // pred_fallthru
        _
      %p215 = scmp.lt.s32.totalorder %s26, 2
      // Predicated region
      $region29: #{tpu_custom_call.1} parent=5 // pred_check
        %p216 = pneg %p215
      $region30: #{tpu_custom_call.1} parent=5 // pred_check_branch
        %218 = sbr.rel (%p216) target = $region32
      $region31: #{tpu_custom_call.1} parent=5 // pred_region
        // Predicated region
        $region33: #{tpu_custom_call.1} parent=31 // pred_check
          %p219 = pneg %p46
        $region34: #{tpu_custom_call.1} parent=31 // pred_check_branch
          %221 = sbr.rel (%p219) target = $region36
        $region35: #{tpu_custom_call.1} parent=31 // pred_region
          %p222 = scmp.lt.s32.totalorder %s26, 1
          %s223 = scalar_select %p222, %s26, 1
          %s224 = smul.addr %s223, 8
          %s225 = scalar_lea.vmem %s1, %s224
        $region36: #{tpu_custom_call.1} parent=31 // pred_fallthru
          _
      $region32: #{tpu_custom_call.1} parent=5 // pred_fallthru
        _
      %p226 = scmp.le.s32.totalorder 1, %s26
      %p227 = scmp.lt.s32.totalorder %s26, 3
      %p228 = pnand %p226, %p227
      %p229 = pneg %p228
      // Predicated region
      $region37: #{tpu_custom_call.1} parent=5 // pred_check
        _
      $region38: #{tpu_custom_call.1} parent=5 // pred_check_branch
        %231 = sbr.rel (%p228) target = $region40
      $region39: #{tpu_custom_call.1} parent=5 // pred_region
        %s232 = ssub.s32 %s26, 1
        %p233 = scmp.lt.s32.totalorder %s31, 1
        %s234 = scalar_select %p233, %s31, 1
        %s235 = smul.addr %s234, 8
        %s236 = scalar_lea.vmem %s1, %s235
        %p237 = pneg %p52
        %p238 = pneg %p49
        %p239 = pneg %p73
        %p240 = pneg %p70
        %p241 = pneg %p94
        %p242 = pneg %p91
        %p243 = pneg %p115
        %p244 = pneg %p112
        %p245 = pneg %p136
        %p246 = pneg %p133
        %p247 = pneg %p162
        %p248 = pneg %p159
        %s249 = sand.u32 %s149, 1
        %s250 = scalar_lea.sflag [#allocation6], %s249
        %s251 = sand.u32 %s149, 1
        %s252 = smul.addr %s251, 16
        %s253 = scalar_lea.vmem [#allocation5], %s252
        %p254 = pneg %p188
        %p255 = pneg %p185
        %s256 = sand.u32 %s175, 1
        %s257 = scalar_lea.sflag [#allocation8], %s256
        %s258 = sand.u32 %s175, 1
        %s259 = smul.addr %s258, 8
        %s260 = scalar_lea.vmem [#allocation7], %s259
        %p261 = scmp.lt.s32.totalorder %s31, 1
        %s262 = scalar_select %p261, %s31, 1
        %s263 = smul.addr %s262, 8
        %s264 = scalar_lea.vmem %s1, %s263
        %s265 = sld [smem:[#allocation4 + %s31]]
        %v266 = vld [vmem:[%s264] sm:$0xff]
        %v267 = vld [vmem:[%s2] sm:$0xff]
        %v268 = vld [vmem:[%s2 + $0x8] sm:$0xff]
        %v269 = vld [vmem:[%s2 + $0x10] sm:$0x1]
        %vm270 = vcmask 138240
        %v272 = vsel %vm270, %v266, 0
        %vm274 = vcmask 1040384
        %v276 = vsel %vm274, %v269, 0
        %278 = vmatprep.subr.mxu0 0.0
        %279 = vmatpush1.msra.mxu0 %v267
        %280 = vmatprep.subr.mxu0 0.0
        %281 = vmatpush1.msra.mxu0 %v268
        %282 = vmatprep.subr.mxu0 0.0
        %283 = vmatpush1.msra.mxu0 %v276
        %284 = vmatprep.subr.mxu0 0.0
        %285 = vmatpush1.msra.mxu0 0.0
        %286 = vmatprep.subr.mxu0 0.0
        %287 = vmatpush1.msra.mxu0 0.0
        %288 = vmatprep.subr.mxu0 0.0
        %289 = vmatpush1.msra.mxu0 0.0
        %290 = vmatprep.subr.mxu0 0.0
        %291 = vmatpush1.msra.mxu0 0.0
        %292 = vmatprep.subr.mxu0 0.0
        %293 = vmatpush1.msra.mxu0 0.0
        %294 = vmatprep.subr.mxu0 0.0
        %295 = vmatpush1.msra.mxu0 0.0
        %296 = vmatprep.subr.mxu0 0.0
        %297 = vmatpush1.msra.mxu0 0.0
        %298 = vmatprep.subr.mxu0 0.0
        %299 = vmatpush1.msra.mxu0 0.0
        %300 = vmatprep.subr.mxu0 0.0
        %301 = vmatpush1.msra.mxu0 0.0
        %302 = vmatprep.subr.mxu0 0.0
        %303 = vmatpush1.msra.mxu0 0.0
        %304 = vmatprep.subr.mxu0 0.0
        %305 = vmatpush1.msra.mxu0 0.0
        %306 = vmatprep.subr.mxu0 0.0
        %307 = vmatpush1.msra.mxu0 0.0
        %308 = vmatprep.subr.mxu0 0.0
        %309 = vmatpush1.msra.mxu0 0.0
        %310 = vmatprep.subr.mxu0 0.0
        %311 = vmatpush1.msra.mxu0 0.0
        %312 = vmatprep.subr.mxu0 0.0
        %313 = vmatpush1.msra.mxu0 0.0
        %314 = vmatprep.subr.mxu0 0.0
        %315 = vmatpush1.msra.mxu0 0.0
        %316 = vmatprep.subr.mxu0 0.0
        %317 = vmatpush1.msra.mxu0 0.0
        %318 = vmatprep.subr.mxu0 0.0
        %319 = vmatpush1.msra.mxu0 0.0
        %320 = vmatprep.subr.mxu0 0.0
        %321 = vmatpush1.msra.mxu0 0.0
        %322 = vmatprep.subr.mxu0 0.0
        %323 = vmatpush1.msra.mxu0 0.0
        %324 = vmatprep.subr.mxu0 0.0
        %325 = vmatpush1.msra.mxu0 0.0
        %326 = vmatprep.subr.mxu0 0.0
        %327 = vmatpush1.msra.mxu0 0.0
        %328 = vmatprep.subr.mxu0 0.0
        %329 = vmatpush1.msra.mxu0 0.0
        %330 = vmatprep.subr.mxu0 0.0
        %331 = vmatpush1.msra.mxu0 0.0
        %332 = vmatprep.subr.mxu0 0.0
        %333 = vmatpush1.msra.mxu0 0.0
        %334 = vmatprep.subr.mxu0 0.0
        %335 = vmatpush1.msra.mxu0 0.0
        %336 = vmatprep.subr.mxu0 0.0
        %337 = vmatpush1.msra.mxu0 0.0
        %338 = vmatprep.subr.mxu0 0.0
        %339 = vmatpush1.msra.mxu0 0.0
        %340 = vmatprep.subr.mxu0 0.0
        %341 = vmatpush1.msra.mxu0 0.0
        %342 = vmatprep.mubr.f32.mxu0 0.0
        %343 = vmatmul.mubr.f32.gmra.mrb[0].mxu0 %v272
        %v344 = vpop.f32.mrb[0].mxu0
        %v345 = vadd.f32 0.0, %v344
        %v346 = vpop.f32.mrb[0].mxu0
        %347 = vdwg.mxu0
        %v348 = vld [vmem:[%s3] sm:$0xff]
        %v349 = vld [vmem:[%s3 + $0x8] sm:$0xff]
        %v350 = vld [vmem:[%s3 + $0x10] sm:$0x1]
        %v352 = vsel %vm274, %v350, 0
        %354 = vmatprep.subr.mxu0 0.0
        %355 = vmatpush1.msra.mxu0 %v348
        %356 = vmatprep.subr.mxu0 0.0
        %357 = vmatpush1.msra.mxu0 %v349
        %358 = vmatprep.subr.mxu0 0.0
        %359 = vmatpush1.msra.mxu0 %v352
        %360 = vmatprep.subr.mxu0 0.0
        %361 = vmatpush1.msra.mxu0 0.0
        %362 = vmatprep.subr.mxu0 0.0
        %363 = vmatpush1.msra.mxu0 0.0
        %364 = vmatprep.subr.mxu0 0.0
        %365 = vmatpush1.msra.mxu0 0.0
        %366 = vmatprep.subr.mxu0 0.0
        %367 = vmatpush1.msra.mxu0 0.0
        %368 = vmatprep.subr.mxu0 0.0
        %369 = vmatpush1.msra.mxu0 0.0
        %370 = vmatprep.subr.mxu0 0.0
        %371 = vmatpush1.msra.mxu0 0.0
        %372 = vmatprep.subr.mxu0 0.0
        %373 = vmatpush1.msra.mxu0 0.0
        %374 = vmatprep.subr.mxu0 0.0
        %375 = vmatpush1.msra.mxu0 0.0
        %376 = vmatprep.subr.mxu0 0.0
        %377 = vmatpush1.msra.mxu0 0.0
        %378 = vmatprep.subr.mxu0 0.0
        %379 = vmatpush1.msra.mxu0 0.0
        %380 = vmatprep.subr.mxu0 0.0
        %381 = vmatpush1.msra.mxu0 0.0
        %382 = vmatprep.subr.mxu0 0.0
        %383 = vmatpush1.msra.mxu0 0.0
        %384 = vmatprep.subr.mxu0 0.0
        %385 = vmatpush1.msra.mxu0 0.0
        %386 = vmatprep.subr.mxu0 0.0
        %387 = vmatpush1.msra.mxu0 0.0
        %388 = vmatprep.subr.mxu0 0.0
        %389 = vmatpush1.msra.mxu0 0.0
        %390 = vmatprep.subr.mxu0 0.0
        %391 = vmatpush1.msra.mxu0 0.0
        %392 = vmatprep.subr.mxu0 0.0
        %393 = vmatpush1.msra.mxu0 0.0
        %394 = vmatprep.subr.mxu0 0.0
        %395 = vmatpush1.msra.mxu0 0.0
        %396 = vmatprep.subr.mxu0 0.0
        %397 = vmatpush1.msra.mxu0 0.0
        %398 = vmatprep.subr.mxu0 0.0
        %399 = vmatpush1.msra.mxu0 0.0
        %400 = vmatprep.subr.mxu0 0.0
        %401 = vmatpush1.msra.mxu0 0.0
        %402 = vmatprep.subr.mxu0 0.0
        %403 = vmatpush1.msra.mxu0 0.0
        %404 = vmatprep.subr.mxu0 0.0
        %405 = vmatpush1.msra.mxu0 0.0
        %406 = vmatprep.subr.mxu0 0.0
        %407 = vmatpush1.msra.mxu0 0.0
        %408 = vmatprep.subr.mxu0 0.0
        %409 = vmatpush1.msra.mxu0 0.0
        %410 = vmatprep.subr.mxu0 0.0
        %411 = vmatpush1.msra.mxu0 0.0
        %412 = vmatprep.subr.mxu0 0.0
        %413 = vmatpush1.msra.mxu0 0.0
        %414 = vmatprep.subr.mxu0 0.0
        %415 = vmatpush1.msra.mxu0 0.0
        %416 = vmatprep.subr.mxu0 0.0
        %417 = vmatpush1.msra.mxu0 0.0
        %418 = vmatprep.mubr.f32.mxu0 0.0
        %419 = vmatmul.mubr.f32.gmra.mrb[0].mxu0 %v272
        %v420 = vpop.f32.mrb[0].mxu0
        %v421 = vadd.f32 0.0, %v420
        %v422 = vpop.f32.mrb[0].mxu0
        %423 = vdwg.mxu0
        %v424 = vlaneseq
        %v425 = vshrl.u32 %v424, 7
        %v426 = vstv %s265
        %vm427 = vcmp.lt.s32.totalorder %v425, %v426
        %v428 = vsel %vm427, 1, 0
        %v429 = vcvt.s32.f32 %v428
        %v430 = vlaneseq
        %v431 = vand.u32 %v430, 127
        %vm432 = vcmp.lt.s32.totalorder %v431, %v426
        %v433 = vmul.f32 %v421, %v429
        %435 = vrot.lane.b32.xlu0 %v345, 64
        %v436 = vpop.permute.xlu0 %435
        %vm437 = vcmask 261120
        %v438 = vsel %vm437, %v345, 0
        %v440 = vsel %vm437, %v436, 0
        %442 = vmatprep.subr.mxu0 0.0
        %443 = vmatpush1.xpose.msra.mxu0 %v440
        %444 = vmatprep.subr.mxu0 0.0
        %445 = vmatpush1.xpose.msra.mxu0 0.0
        %446 = vmatprep.subr.mxu0 0.0
        %447 = vmatpush1.xpose.msra.mxu0 0.0
        %448 = vmatprep.subr.mxu0 0.0
        %449 = vmatpush1.xpose.msra.mxu0 0.0
        %450 = vmatprep.subr.mxu0 0.0
        %451 = vmatpush1.xpose.msra.mxu0 0.0
        %452 = vmatprep.subr.mxu0 0.0
        %453 = vmatpush1.xpose.msra.mxu0 0.0
        %454 = vmatprep.subr.mxu0 0.0
        %455 = vmatpush1.xpose.msra.mxu0 0.0
        %456 = vmatprep.subr.mxu0 0.0
        %457 = vmatpush1.xpose.msra.mxu0 0.0
        %458 = vmatprep.subr.mxu0 0.0
        %459 = vmatpush1.xpose.msra.mxu0 0.0
        %460 = vmatprep.subr.mxu0 0.0
        %461 = vmatpush1.xpose.msra.mxu0 0.0
        %462 = vmatprep.subr.mxu0 0.0
        %463 = vmatpush1.xpose.msra.mxu0 0.0
        %464 = vmatprep.subr.mxu0 0.0
        %465 = vmatpush1.xpose.msra.mxu0 0.0
        %466 = vmatprep.subr.mxu0 0.0
        %467 = vmatpush1.xpose.msra.mxu0 0.0
        %468 = vmatprep.subr.mxu0 0.0
        %469 = vmatpush1.xpose.msra.mxu0 0.0
        %470 = vmatprep.subr.mxu0 0.0
        %471 = vmatpush1.xpose.msra.mxu0 0.0
        %472 = vmatprep.subr.mxu0 0.0
        %473 = vmatpush1.xpose.msra.mxu0 0.0
        %474 = vmatprep.subr.mxu0 0.0
        %475 = vmatpush1.xpose.msra.mxu0 0.0
        %476 = vmatprep.subr.mxu0 0.0
        %477 = vmatpush1.xpose.msra.mxu0 0.0
        %478 = vmatprep.subr.mxu0 0.0
        %479 = vmatpush1.xpose.msra.mxu0 0.0
        %480 = vmatprep.subr.mxu0 0.0
        %481 = vmatpush1.xpose.msra.mxu0 0.0
        %482 = vmatprep.subr.mxu0 0.0
        %483 = vmatpush1.xpose.msra.mxu0 0.0
        %484 = vmatprep.subr.mxu0 0.0
        %485 = vmatpush1.xpose.msra.mxu0 0.0
        %486 = vmatprep.subr.mxu0 0.0
        %487 = vmatpush1.xpose.msra.mxu0 0.0
        %488 = vmatprep.subr.mxu0 0.0
        %489 = vmatpush1.xpose.msra.mxu0 0.0
        %490 = vmatprep.subr.mxu0 0.0
        %491 = vmatpush1.xpose.msra.mxu0 0.0
        %492 = vmatprep.subr.mxu0 0.0
        %493 = vmatpush1.xpose.msra.mxu0 0.0
        %494 = vmatprep.subr.mxu0 0.0
        %495 = vmatpush1.xpose.msra.mxu0 0.0
        %496 = vmatprep.subr.mxu0 0.0
        %497 = vmatpush1.xpose.msra.mxu0 0.0
        %498 = vmatprep.subr.mxu0 0.0
        %499 = vmatpush1.xpose.msra.mxu0 0.0
        %500 = vmatprep.subr.mxu0 0.0
        %501 = vmatpush1.xpose.msra.mxu0 0.0
        %502 = vmatprep.subr.mxu0 0.0
        %503 = vmatpush1.xpose.msra.mxu0 0.0
        %504 = vmatprep.subr.mxu0 0.0
        %505 = vmatpush1.xpose.msra.mxu0 0.0
        %506 = vmatprep.mubr.f32.mxu0 0.0
        %507 = vmatmul.mubr.f32.gmra.mrb[0].mxu0 %v438
        %v508 = vpop.f32.mrb[0].mxu0
        %v509 = vadd.f32 0.0, %v508
        %v510 = vpop.f32.mrb[0].mxu0
        %511 = vdwg.mxu0
        %v512 = vmul.f32 %v509, 0.17677669
        %v513 = vsel %vm432, %v512, -1e+09
        %vm514 = vcmask 64512
        %v515 = vsel %vm514, %v513, -inf
        %516 = vmax.xlane.f32.xlu0 %v515
        %v517 = vpop.xlane.xlu0 %516
        %v518 = vsub.f32 %v513, %v517
        %v519 = vmul.f32 %v518, 1.442695
        %v520 = vpow.pop %v519
        %v521 = vsel %vm514, %v520, 0.0
        %522 = vadd.xlane.f32.xlu0 %v521
        %v523 = vpop.xlane.xlu0 %522
        %v524 = vrcp.pop %v523
        %v525 = vmul.f32 %v520, %v524
        %526 = vst.msk [vmem:[%s253] sm:$0xff] %vm514, %v525
        %v528 = vsel %vm514, %v525, 0
        %530 = vmatprep.subr.mxu0 0.0
        %531 = vmatpush1.msra.mxu0 %v433
        %532 = vmatprep.subr.mxu0 0.0
        %533 = vmatpush1.msra.mxu0 0.0
        %534 = vmatprep.subr.mxu0 0.0
        %535 = vmatpush1.msra.mxu0 0.0
        %536 = vmatprep.subr.mxu0 0.0
        %537 = vmatpush1.msra.mxu0 0.0
        %538 = vmatprep.subr.mxu0 0.0
        %539 = vmatpush1.msra.mxu0 0.0
        %540 = vmatprep.subr.mxu0 0.0
        %541 = vmatpush1.msra.mxu0 0.0
        %542 = vmatprep.subr.mxu0 0.0
        %543 = vmatpush1.msra.mxu0 0.0
        %544 = vmatprep.subr.mxu0 0.0
        %545 = vmatpush1.msra.mxu0 0.0
        %546 = vmatprep.subr.mxu0 0.0
        %547 = vmatpush1.msra.mxu0 0.0
        %548 = vmatprep.subr.mxu0 0.0
        %549 = vmatpush1.msra.mxu0 0.0
        %550 = vmatprep.subr.mxu0 0.0
        %551 = vmatpush1.msra.mxu0 0.0
        %552 = vmatprep.subr.mxu0 0.0
        %553 = vmatpush1.msra.mxu0 0.0
        %554 = vmatprep.subr.mxu0 0.0
        %555 = vmatpush1.msra.mxu0 0.0
        %556 = vmatprep.subr.mxu0 0.0
        %557 = vmatpush1.msra.mxu0 0.0
        %558 = vmatprep.subr.mxu0 0.0
        %559 = vmatpush1.msra.mxu0 0.0
        %560 = vmatprep.subr.mxu0 0.0
        %561 = vmatpush1.msra.mxu0 0.0
        %562 = vmatprep.subr.mxu0 0.0
        %563 = vmatpush1.msra.mxu0 0.0
        %564 = vmatprep.subr.mxu0 0.0
        %565 = vmatpush1.msra.mxu0 0.0
        %566 = vmatprep.subr.mxu0 0.0
        %567 = vmatpush1.msra.mxu0 0.0
        %568 = vmatprep.subr.mxu0 0.0
        %569 = vmatpush1.msra.mxu0 0.0
        %570 = vmatprep.subr.mxu0 0.0
        %571 = vmatpush1.msra.mxu0 0.0
        %572 = vmatprep.subr.mxu0 0.0
        %573 = vmatpush1.msra.mxu0 0.0
        %574 = vmatprep.subr.mxu0 0.0
        %575 = vmatpush1.msra.mxu0 0.0
        %576 = vmatprep.subr.mxu0 0.0
        %577 = vmatpush1.msra.mxu0 0.0
        %578 = vmatprep.subr.mxu0 0.0
        %579 = vmatpush1.msra.mxu0 0.0
        %580 = vmatprep.subr.mxu0 0.0
        %581 = vmatpush1.msra.mxu0 0.0
        %582 = vmatprep.subr.mxu0 0.0
        %583 = vmatpush1.msra.mxu0 0.0
        %584 = vmatprep.subr.mxu0 0.0
        %585 = vmatpush1.msra.mxu0 0.0
        %586 = vmatprep.subr.mxu0 0.0
        %587 = vmatpush1.msra.mxu0 0.0
        %588 = vmatprep.subr.mxu0 0.0
        %589 = vmatpush1.msra.mxu0 0.0
        %590 = vmatprep.subr.mxu0 0.0
        %591 = vmatpush1.msra.mxu0 0.0
        %592 = vmatprep.subr.mxu0 0.0
        %593 = vmatpush1.msra.mxu0 0.0
        %594 = vmatprep.mubr.f32.mxu0 0.0
        %595 = vmatmul.mubr.f32.gmra.mrb[0].mxu0 %v528
        %v596 = vpop.f32.mrb[0].mxu0
        %v597 = vadd.f32 0.0, %v596
        %v598 = vpop.f32.mrb[0].mxu0
        %599 = vdwg.mxu0
        %600 = vst.msk [vmem:[#allocation2] sm:$0xff] %vm437, %v597
        %601 = vrot.lane.b32.xlu0 %v345, 96
        %v602 = vpop.permute.xlu0 %601
        %603 = vrot.lane.b32.xlu0 %v345, 32
        %v604 = vpop.permute.xlu0 %603
        %v605 = vsel %vm437, %v602, 0
        %v607 = vsel %vm437, %v604, 0
        %609 = vmatprep.subr.mxu0 0.0
        %610 = vmatpush1.xpose.msra.mxu0 %v607
        %611 = vmatprep.subr.mxu0 0.0
        %612 = vmatpush1.xpose.msra.mxu0 0.0
        %613 = vmatprep.subr.mxu0 0.0
        %614 = vmatpush1.xpose.msra.mxu0 0.0
        %615 = vmatprep.subr.mxu0 0.0
        %616 = vmatpush1.xpose.msra.mxu0 0.0
        %617 = vmatprep.subr.mxu0 0.0
        %618 = vmatpush1.xpose.msra.mxu0 0.0
        %619 = vmatprep.subr.mxu0 0.0
        %620 = vmatpush1.xpose.msra.mxu0 0.0
        %621 = vmatprep.subr.mxu0 0.0
        %622 = vmatpush1.xpose.msra.mxu0 0.0
        %623 = vmatprep.subr.mxu0 0.0
        %624 = vmatpush1.xpose.msra.mxu0 0.0
        %625 = vmatprep.subr.mxu0 0.0
        %626 = vmatpush1.xpose.msra.mxu0 0.0
        %627 = vmatprep.subr.mxu0 0.0
        %628 = vmatpush1.xpose.msra.mxu0 0.0
        %629 = vmatprep.subr.mxu0 0.0
        %630 = vmatpush1.xpose.msra.mxu0 0.0
        %631 = vmatprep.subr.mxu0 0.0
        %632 = vmatpush1.xpose.msra.mxu0 0.0
        %633 = vmatprep.subr.mxu0 0.0
        %634 = vmatpush1.xpose.msra.mxu0 0.0
        %635 = vmatprep.subr.mxu0 0.0
        %636 = vmatpush1.xpose.msra.mxu0 0.0
        %637 = vmatprep.subr.mxu0 0.0
        %638 = vmatpush1.xpose.msra.mxu0 0.0
        %639 = vmatprep.subr.mxu0 0.0
        %640 = vmatpush1.xpose.msra.mxu0 0.0
        %641 = vmatprep.subr.mxu0 0.0
        %642 = vmatpush1.xpose.msra.mxu0 0.0
        %643 = vmatprep.subr.mxu0 0.0
        %644 = vmatpush1.xpose.msra.mxu0 0.0
        %645 = vmatprep.subr.mxu0 0.0
        %646 = vmatpush1.xpose.msra.mxu0 0.0
        %647 = vmatprep.subr.mxu0 0.0
        %648 = vmatpush1.xpose.msra.mxu0 0.0
        %649 = vmatprep.subr.mxu0 0.0
        %650 = vmatpush1.xpose.msra.mxu0 0.0
        %651 = vmatprep.subr.mxu0 0.0
        %652 = vmatpush1.xpose.msra.mxu0 0.0
        %653 = vmatprep.subr.mxu0 0.0
        %654 = vmatpush1.xpose.msra.mxu0 0.0
        %655 = vmatprep.subr.mxu0 0.0
        %656 = vmatpush1.xpose.msra.mxu0 0.0
        %657 = vmatprep.subr.mxu0 0.0
        %658 = vmatpush1.xpose.msra.mxu0 0.0
        %659 = vmatprep.subr.mxu0 0.0
        %660 = vmatpush1.xpose.msra.mxu0 0.0
        %661 = vmatprep.subr.mxu0 0.0
        %662 = vmatpush1.xpose.msra.mxu0 0.0
        %663 = vmatprep.subr.mxu0 0.0
        %664 = vmatpush1.xpose.msra.mxu0 0.0
        %665 = vmatprep.subr.mxu0 0.0
        %666 = vmatpush1.xpose.msra.mxu0 0.0
        %667 = vmatprep.subr.mxu0 0.0
        %668 = vmatpush1.xpose.msra.mxu0 0.0
        %669 = vmatprep.subr.mxu0 0.0
        %670 = vmatpush1.xpose.msra.mxu0 0.0
        %671 = vmatprep.subr.mxu0 0.0
        %672 = vmatpush1.xpose.msra.mxu0 0.0
        %673 = vmatprep.mubr.f32.mxu0 0.0
        %674 = vmatmul.mubr.f32.gmra.mrb[0].mxu0 %v605
        %v675 = vpop.f32.mrb[0].mxu0
        %v676 = vadd.f32 0.0, %v675
        %v677 = vpop.f32.mrb[0].mxu0
        %678 = vdwg.mxu0
        %v679 = vmul.f32 %v676, 0.17677669
        %v680 = vsel %vm432, %v679, -1e+09
        %v681 = vsel %vm514, %v680, -inf
        %682 = vmax.xlane.f32.xlu0 %v681
        %v683 = vpop.xlane.xlu0 %682
        %v684 = vsub.f32 %v680, %v683
        %v685 = vmul.f32 %v684, 1.442695
        %v686 = vpow.pop %v685
        %v687 = vsel %vm514, %v686, 0.0
        %688 = vadd.xlane.f32.xlu0 %v687
        %v689 = vpop.xlane.xlu0 %688
        %v690 = vrcp.pop %v689
        %v691 = vmul.f32 %v686, %v690
        %s692 = scalar_lea.vmem %s253, 8 [#allocation5]
        %693 = vst.msk [vmem:[%s692] sm:$0xff] %vm514, %v691
        %695 = vrot.lane.b32.xlu0 %v433, 96
        %v696 = vpop.permute.xlu0 %695
        %v699 = vsel %vm514, %v691, 0
        %701 = vmatprep.subr.mxu0 0.0
        %702 = vmatpush1.msra.mxu0 %v696
        %703 = vmatprep.subr.mxu0 0.0
        %704 = vmatpush1.msra.mxu0 0.0
        %705 = vmatprep.subr.mxu0 0.0
        %706 = vmatpush1.msra.mxu0 0.0
        %707 = vmatprep.subr.mxu0 0.0
        %708 = vmatpush1.msra.mxu0 0.0
        %709 = vmatprep.subr.mxu0 0.0
        %710 = vmatpush1.msra.mxu0 0.0
        %711 = vmatprep.subr.mxu0 0.0
        %712 = vmatpush1.msra.mxu0 0.0
        %713 = vmatprep.subr.mxu0 0.0
        %714 = vmatpush1.msra.mxu0 0.0
        %715 = vmatprep.subr.mxu0 0.0
        %716 = vmatpush1.msra.mxu0 0.0
        %717 = vmatprep.subr.mxu0 0.0
        %718 = vmatpush1.msra.mxu0 0.0
        %719 = vmatprep.subr.mxu0 0.0
        %720 = vmatpush1.msra.mxu0 0.0
        %721 = vmatprep.subr.mxu0 0.0
        %722 = vmatpush1.msra.mxu0 0.0
        %723 = vmatprep.subr.mxu0 0.0
        %724 = vmatpush1.msra.mxu0 0.0
        %725 = vmatprep.subr.mxu0 0.0
        %726 = vmatpush1.msra.mxu0 0.0
        %727 = vmatprep.subr.mxu0 0.0
        %728 = vmatpush1.msra.mxu0 0.0
        %729 = vmatprep.subr.mxu0 0.0
        %730 = vmatpush1.msra.mxu0 0.0
        %731 = vmatprep.subr.mxu0 0.0
        %732 = vmatpush1.msra.mxu0 0.0
        %733 = vmatprep.subr.mxu0 0.0
        %734 = vmatpush1.msra.mxu0 0.0
        %735 = vmatprep.subr.mxu0 0.0
        %736 = vmatpush1.msra.mxu0 0.0
        %737 = vmatprep.subr.mxu0 0.0
        %738 = vmatpush1.msra.mxu0 0.0
        %739 = vmatprep.subr.mxu0 0.0
        %740 = vmatpush1.msra.mxu0 0.0
        %741 = vmatprep.subr.mxu0 0.0
        %742 = vmatpush1.msra.mxu0 0.0
        %743 = vmatprep.subr.mxu0 0.0
        %744 = vmatpush1.msra.mxu0 0.0
        %745 = vmatprep.subr.mxu0 0.0
        %746 = vmatpush1.msra.mxu0 0.0
        %747 = vmatprep.subr.mxu0 0.0
        %748 = vmatpush1.msra.mxu0 0.0
        %749 = vmatprep.subr.mxu0 0.0
        %750 = vmatpush1.msra.mxu0 0.0
        %751 = vmatprep.subr.mxu0 0.0
        %752 = vmatpush1.msra.mxu0 0.0
        %753 = vmatprep.subr.mxu0 0.0
        %754 = vmatpush1.msra.mxu0 0.0
        %755 = vmatprep.subr.mxu0 0.0
        %756 = vmatpush1.msra.mxu0 0.0
        %757 = vmatprep.subr.mxu0 0.0
        %758 = vmatpush1.msra.mxu0 0.0
        %759 = vmatprep.subr.mxu0 0.0
        %760 = vmatpush1.msra.mxu0 0.0
        %761 = vmatprep.subr.mxu0 0.0
        %762 = vmatpush1.msra.mxu0 0.0
        %763 = vmatprep.subr.mxu0 0.0
        %764 = vmatpush1.msra.mxu0 0.0
        %765 = vmatprep.mubr.f32.mxu0 0.0
        %766 = vmatmul.mubr.f32.gmra.mrb[0].mxu0 %v699
        %v767 = vpop.f32.mrb[0].mxu0
        %v768 = vadd.f32 0.0, %v767
        %v769 = vpop.f32.mrb[0].mxu0
        %770 = vdwg.mxu0
        %772 = vrot.lane.b32.xlu0 %v768, 32
        %v773 = vpop.permute.xlu0 %772
        %vm775 = vcmask 523520
        %776 = vst.msk [vmem:[#allocation2] sm:$0xff] %vm775, %v773
        %v777 = vld [vmem:[#allocation2] sm:$0xff]
        %v778 = vld [vmem:[%s4] sm:$0xff]
        %v779 = vld [vmem:[%s4 + $0x8] sm:$0xff]
        %v780 = vld [vmem:[%s4 + $0x10] sm:$0xff]
        %v781 = vld [vmem:[%s4 + $0x18] sm:$0xff]
        %v782 = vld [vmem:[%s4 + $0x20] sm:$0xff]
        %v783 = vld [vmem:[%s4 + $0x28] sm:$0xff]
        %v784 = vld [vmem:[%s4 + $0x30] sm:$0xff]
        %v785 = vld [vmem:[%s4 + $0x38] sm:$0xff]
        %v786 = vld [vmem:[%s5] sm:$0x1]
        %v788 = vlaneseq
        %v789 = vshrl.u32 %v788, 7
        %v790 = vsub.s32 0, %v789
        %v791 = vrot.slane %v786, %v790
        %vm793 = vcmask 523264
        %v795 = vsel %vm793, %v777, 0
        %797 = vmatprep.subr.mxu0 0.0
        %798 = vmatpush1.msra.mxu0 %v778
        %799 = vmatprep.subr.mxu0 0.0
        %800 = vmatpush1.msra.mxu0 %v779
        %801 = vmatprep.subr.mxu0 0.0
        %802 = vmatpush1.msra.mxu0 %v780
        %803 = vmatprep.subr.mxu0 0.0
        %804 = vmatpush1.msra.mxu0 %v781
        %805 = vmatprep.subr.mxu0 0.0
        %806 = vmatpush1.msra.mxu0 %v782
        %807 = vmatprep.subr.mxu0 0.0
        %808 = vmatpush1.msra.mxu0 %v783
        %809 = vmatprep.subr.mxu0 0.0
        %810 = vmatpush1.msra.mxu0 %v784
        %811 = vmatprep.subr.mxu0 0.0
        %812 = vmatpush1.msra.mxu0 %v785
        %813 = vmatprep.subr.mxu0 0.0
        %814 = vmatpush1.msra.mxu0 0.0
        %815 = vmatprep.subr.mxu0 0.0
        %816 = vmatpush1.msra.mxu0 0.0
        %817 = vmatprep.subr.mxu0 0.0
        %818 = vmatpush1.msra.mxu0 0.0
        %819 = vmatprep.subr.mxu0 0.0
        %820 = vmatpush1.msra.mxu0 0.0
        %821 = vmatprep.subr.mxu0 0.0
        %822 = vmatpush1.msra.mxu0 0.0
        %823 = vmatprep.subr.mxu0 0.0
        %824 = vmatpush1.msra.mxu0 0.0
        %825 = vmatprep.subr.mxu0 0.0
        %826 = vmatpush1.msra.mxu0 0.0
        %827 = vmatprep.subr.mxu0 0.0
        %828 = vmatpush1.msra.mxu0 0.0
        %829 = vmatprep.subr.mxu0 0.0
        %830 = vmatpush1.msra.mxu0 0.0
        %831 = vmatprep.subr.mxu0 0.0
        %832 = vmatpush1.msra.mxu0 0.0
        %833 = vmatprep.subr.mxu0 0.0
        %834 = vmatpush1.msra.mxu0 0.0
        %835 = vmatprep.subr.mxu0 0.0
        %836 = vmatpush1.msra.mxu0 0.0
        %837 = vmatprep.subr.mxu0 0.0
        %838 = vmatpush1.msra.mxu0 0.0
        %839 = vmatprep.subr.mxu0 0.0
        %840 = vmatpush1.msra.mxu0 0.0
        %841 = vmatprep.subr.mxu0 0.0
        %842 = vmatpush1.msra.mxu0 0.0
        %843 = vmatprep.subr.mxu0 0.0
        %844 = vmatpush1.msra.mxu0 0.0
        %845 = vmatprep.subr.mxu0 0.0
        %846 = vmatpush1.msra.mxu0 0.0
        %847 = vmatprep.subr.mxu0 0.0
        %848 = vmatpush1.msra.mxu0 0.0
        %849 = vmatprep.subr.mxu0 0.0
        %850 = vmatpush1.msra.mxu0 0.0
        %851 = vmatprep.subr.mxu0 0.0
        %852 = vmatpush1.msra.mxu0 0.0
        %853 = vmatprep.subr.mxu0 0.0
        %854 = vmatpush1.msra.mxu0 0.0
        %855 = vmatprep.subr.mxu0 0.0
        %856 = vmatpush1.msra.mxu0 0.0
        %857 = vmatprep.subr.mxu0 0.0
        %858 = vmatpush1.msra.mxu0 0.0
        %859 = vmatprep.subr.mxu0 0.0
        %860 = vmatpush1.msra.mxu0 0.0
        %861 = vmatprep.mubr.f32.mxu0 0.0
        %862 = vmatmul.mubr.f32.gmra.mrb[0].mxu0 %v795
        %v863 = vpop.f32.mrb[0].mxu0
        %v864 = vadd.f32 %v791, %v863
        %v865 = vpop.f32.mrb[0].mxu0
        %866 = vdwg.mxu0
        %v867 = vmul.f32 %v864, %v429
        %vm868 = vcmask 130048
        %869 = vst.msk [vmem:[%s260] sm:$0xff] %vm868, %v867
        %s870 = sand.u32 %s149, 1
        %s871 = scalar_lea.sflag [#allocation6], %s870
        %s872 = sand.u32 %s149, 1
        %s873 = smul.addr %s872, 16
        %s874 = scalar_lea.vmem [#allocation5], %s873
        %s875 = sand.u32 %s175, 1
        %s876 = scalar_lea.sflag [#allocation8], %s875
        %s877 = sand.u32 %s175, 1
        %s878 = smul.addr %s877, 8
        %s879 = scalar_lea.vmem [#allocation7], %s878
        // Predicated region
        $region41: #{tpu_custom_call.1} parent=39 // pred_check
          %p880 = pneg %p159
        $region42: #{tpu_custom_call.1} parent=39 // pred_check_branch
          %882 = sbr.rel (%p880) target = $region44
        $region43: #{tpu_custom_call.1} parent=39 // pred_region
          %s884 = ssub.s32 256, 256
          %885 = vsyncadd %s871, %s884
          %s886 = smul.addr %s31, 2
          %s887 = smul.addr %s886, 128
          %s888 = scalar_lea.hbm %s6, %s887
          %s889 = sshll.u32 %s874, 4
          %s890 = int_to_ptr.vmem [resolvable:$true] %s889
          %895 = dma.vmem_to_hbm [thread:$0]  %s890, 256, %s888, %s871, 128, 128, 8
        $region44: #{tpu_custom_call.1} parent=39 // pred_fallthru
          _
        // Predicated region
        $region45: #{tpu_custom_call.1} parent=39 // pred_check
          %p896 = pneg %p185
        $region46: #{tpu_custom_call.1} parent=39 // pred_check_branch
          %898 = sbr.rel (%p896) target = $region48
        $region47: #{tpu_custom_call.1} parent=39 // pred_region
          %s900 = ssub.s32 128, 128
          %901 = vsyncadd %s876, %s900
          %s902 = smul.addr %s31, 128
          %s903 = scalar_lea.hbm %s7, %s902
          %s905 = sshll.u32 %s879, 4
          %s906 = int_to_ptr.vmem [resolvable:$true] %s905
          %908 = dma.vmem_to_hbm [thread:$0]  %s906, 128, %s903, %s876
        $region48: #{tpu_custom_call.1} parent=39 // pred_fallthru
          _
      $region40: #{tpu_custom_call.1} parent=5 // pred_fallthru
        _
      %p909 = scmp.le.s32.totalorder 2, %s26
      // Predicated region
      $region49: #{tpu_custom_call.1} parent=5 // pred_check
        %p910 = pneg %p909
      $region50: #{tpu_custom_call.1} parent=5 // pred_check_branch
        %912 = sbr.rel (%p910) target = $region52
      $region51: #{tpu_custom_call.1} parent=5 // pred_region
        %s913 = ssub.s32 %s26, 2
        // Predicated region
        $region53: #{tpu_custom_call.1} parent=51 // pred_check
          %p914 = pneg %p165
        $region54: #{tpu_custom_call.1} parent=51 // pred_check_branch
          %916 = sbr.rel (%p914) target = $region56
        $region55: #{tpu_custom_call.1} parent=51 // pred_region
          %s917 = sand.u32 %s150, 1
          %s918 = scalar_lea.sflag [#allocation6], %s917
          %s919 = sand.u32 %s150, 1
          %s920 = smul.addr %s919, 16
          %s921 = scalar_lea.vmem [#allocation5], %s920
          %922 = dma.done %s918, 256
        $region56: #{tpu_custom_call.1} parent=51 // pred_fallthru
          _
        // Predicated region
        $region57: #{tpu_custom_call.1} parent=51 // pred_check
          %p923 = pneg %p191
        $region58: #{tpu_custom_call.1} parent=51 // pred_check_branch
          %925 = sbr.rel (%p923) target = $region60
        $region59: #{tpu_custom_call.1} parent=51 // pred_region
          %s926 = sand.u32 %s176, 1
          %s927 = scalar_lea.sflag [#allocation8], %s926
          %s928 = sand.u32 %s176, 1
          %s929 = smul.addr %s928, 8
          %s930 = scalar_lea.vmem [#allocation7], %s929
          %931 = dma.done %s927, 128
        $region60: #{tpu_custom_call.1} parent=51 // pred_fallthru
          _
      $region52: #{tpu_custom_call.1} parent=5 // pred_fallthru
        _
    $region6: #{tpu_custom_call.1} parent=1 // loop_footer
      %s30 = sadd.s32 1, %s26
    $region7: #{tpu_custom_call.1} parent=1 // loop_footer_branch
      %25 = sbr.rel target = $region3
    $region8: #{tpu_custom_call.1} parent=1 // loop_exit
      _
    %932 = vsyncpa [#allocation6], 1
    %s933 = scalar_lea.sflag [#allocation6], 1
    %934 = vsyncpa %s933, 1
    %935 = vsyncpa [#allocation8], 1
    %s936 = scalar_lea.sflag [#allocation8], 1
    %937 = vsyncpa %s936, 1

</llo_original>
